<compile_context>
chip_gen: v6e
topology: v6e:2x2x1
jax: 0.10.0
libtpu: 0.0.40
codegen_flags: <defaults>
</compile_context>

<pallas_src>
import functools

import jax
import jax.numpy as jnp
from jax import lax
from jax.experimental import pallas as pl
from jax.experimental.pallas import tpu as pltpu


def _round_up(x, m):
    return (x + m - 1) // m * m


def coatt_kernel(w_valid, x_ref, wcat_ref, bcat_ref, stats_ref, o_ref):
    """One batch element per grid step.

    x_ref    : (1, Cp, Wp) f32   raw input, zero-padded to (Cp, Wp)
    wcat_ref : (Cp, 3*Cp)  bf16  [wq^T | wk^T | wv^T], zero-padded
    bcat_ref : (1, 3*Cp)   f32   [bq | bk | bv], zero-padded
    stats_ref: (3,)        f32   SMEM: [mean, 1/std, gamma]
    o_ref    : (1, Cp, Wp) f32
    """
    mean = stats_ref[0]
    inv_std = stats_ref[1]
    gamma = stats_ref[2]

    cp = x_ref.shape[1]
    wp = x_ref.shape[2]
    bf16 = jnp.bfloat16

    xb = x_ref[0]                         # (Cp, Wp) f32
    xbt = jnp.transpose(xb)               # (Wp, Cp) f32 -- tiny XLU transpose

    # z-scored input in both orientations.  Padded W columns are forced to 0
    # so the gram matrix only sums over the real sequence positions.
    xz = (xb - mean) * inv_std            # (Cp, Wp)
    xzt = (xbt - mean) * inv_std          # (Wp, Cp)
    if w_valid != wp:
        col_valid = lax.broadcasted_iota(jnp.int32, (1, wp), 1) < w_valid
        row_valid = lax.broadcasted_iota(jnp.int32, (wp, 1), 0) < w_valid
        xz = jnp.where(col_valid, xz, 0.0)
        xzt = jnp.where(row_valid, xzt, 0.0)

    # Fused 1x1-conv q/k/v projections (applied to raw x, as in the module):
    # one (Wp, Cp) @ (Cp, 3Cp) matmul, bf16 MXU operands, f32 accumulation,
    # f32 bias add.  Zero-padded weight columns make padded channels exactly 0.
    projt = jnp.dot(xbt.astype(bf16), wcat_ref[...],
                    preferred_element_type=jnp.float32) + bcat_ref[...]   # (Wp, 3Cp)
    pqt = projt[:, :cp]                   # (Wp, Cp)  == proj_query^T
    pkt = projt[:, cp:2 * cp]             # (Wp, Cp)  == proj_key^T
    pvt = projt[:, 2 * cp:]               # (Wp, Cp)  == proj_value^T

    # energy = pq^T @ (xz xz^T) @ pk, reassociated so every matmul is the
    # canonical (M, K) @ (K, N) form; the only relayout ahead of the big
    # (Wp, Wp) product is a tiny (Wp, Cp) -> (Cp, Wp) transpose of pk.
    gram = jnp.dot(xz.astype(bf16), xzt.astype(bf16),
                   preferred_element_type=jnp.float32)                    # (Cp, Cp)
    pk = jnp.transpose(pkt)                                               # (Cp, Wp)
    gk = jnp.dot(gram.astype(bf16), pk.astype(bf16),
                 preferred_element_type=jnp.float32)                      # (Cp, Wp)
    energy = jnp.dot(pqt.astype(bf16), gk.astype(bf16),
                     preferred_element_type=jnp.float32)                  # (Wp, Wp)
    if w_valid != wp:
        energy = jnp.where(col_valid, energy, -1e30)   # mask padded keys

    # Softmax over keys, strictly f32 (v5e has no bf16 VPU/EUP); the
    # denominator reciprocal rides the otherwise-idle EUP slot.
    m = jnp.max(energy, axis=-1, keepdims=True)
    e = jnp.exp(energy - m)
    attn = e * pl.reciprocal(jnp.sum(e, axis=-1, keepdims=True), approx=True)

    # out^T = attn @ pv^T  (canonical (Wp, Wp) @ (Wp, Cp)); do the
    # gamma * out + x_zscore epilogue in (Wp, Cp), then one transpose back to
    # the lane-dense (Cp, Wp) output tile.
    outT = jnp.dot(attn.astype(bf16), pvt.astype(bf16),
                   preferred_element_type=jnp.float32)                    # (Wp, Cp)
    o_ref[0, :, :] = jnp.transpose(gamma * outT + xzt)                    # (Cp, Wp)


@jax.jit
def coatt(x, wq, bq, wk, bk, wv, bv, gamma):
    B, C, W = x.shape
    x = x.astype(jnp.float32)

    # Global z-score statistics (torch.std default: unbiased, n-1), computed
    # once on the unpadded input and handed to every grid step via SMEM.
    # (Could be folded into a first Pallas pass if the kernel is mem-bound.)
    n = B * C * W
    mean = jnp.mean(x)
    var = jnp.sum((x - mean) ** 2) / max(n - 1, 1)
    inv_std = lax.rsqrt(var)
    stats = jnp.stack(
        [mean, inv_std, jnp.reshape(gamma, ()).astype(jnp.float32)])     # (3,)

    # Lane/sublane-friendly padding: W -> multiple of 128 (lane axis of every
    # big tile and of the output store), C -> multiple of 8 (sublane axis,
    # aligned transposes).  Zero padding + in-kernel masking keeps the math
    # identical; the wrapper slices the result back.
    Wp = _round_up(max(W, 128), 128)
    Cp = _round_up(max(C, 8), 8)
    xp = jnp.pad(x, ((0, 0), (0, Cp - C), (0, Wp - W)))

    # Fused q/k/v weights, transposed for the (Wp, Cp) @ (Cp, 3Cp) projection,
    # zero-padded so padded channels contribute exactly 0, bf16 MXU operands.
    def pad_wt(w):
        return jnp.pad(w.astype(jnp.float32).T, ((0, Cp - C), (0, Cp - C)))

    def pad_b(b):
        return jnp.pad(b.astype(jnp.float32), (0, Cp - C))

    wcat = jnp.concatenate([pad_wt(wq), pad_wt(wk), pad_wt(wv)],
                           axis=1).astype(jnp.bfloat16)                  # (Cp, 3Cp)
    bcat = jnp.concatenate([pad_b(bq), pad_b(bk), pad_b(bv)])[None, :]   # (1, 3Cp)

    x_spec = pl.BlockSpec((1, Cp, Wp), lambda b: (b, 0, 0))
    w_spec = pl.BlockSpec((Cp, 3 * Cp), lambda b: (0, 0))
    b_spec = pl.BlockSpec((1, 3 * Cp), lambda b: (0, 0))
    s_spec = pl.BlockSpec(memory_space=pltpu.MemorySpace.SMEM)
    o_spec = pl.BlockSpec((1, Cp, Wp), lambda b: (b, 0, 0))

    # VMEM budget: double-buffered x/out blocks + resident fused weights + the
    # f32 (Wp, Wp) energy/exp/attn intermediates (+ bf16 copies) + skinny
    # (Wp, 3Cp)-class tiles, with slack.  For W >~ 2K the (Wp, Wp) term alone
    # outgrows v7x's 64 MiB VMEM -> needs flash-style tiling over W (and a
    # second parallel grid axis would also fix megacore balance at B == 1).
    vmem_bytes = (
        4 * Cp * Wp * 4                              # x + out blocks, double-buffered
        + 2 * (Cp * 3 * Cp * 2 + 3 * Cp * 4)         # fused weights (bf16) + bias
        + 4 * Wp * Wp * 4                            # energy / exp / attn
        + 12 * Wp * 3 * Cp * 4                       # projt / pq / pk / pv / gk / outT / xz(t)
        + (2 << 20)                                  # slack
    )
    vmem_limit = int(min(max(vmem_bytes, 32 << 20), 64 << 20))

    mm_flops = (2 * Wp * Cp * 3 * Cp        # fused q/k/v projection
                + 2 * Cp * Wp * Cp          # gram = xz @ xz^T
                + 2 * Cp * Cp * Wp          # gk = gram @ pk
                + 2 * Wp * Cp * Wp          # energy
                + 2 * Wp * Wp * Cp)         # attn @ v
    cost = pl.CostEstimate(
        flops=B * (mm_flops + 12 * Cp * Wp + 6 * Wp * Wp),
        transcendentals=B * (Wp * Wp + Wp),
        bytes_accessed=2 * B * Cp * Wp * 4 + 3 * Cp * Cp * 2 + 3 * Cp * 4 + 12,
    )

    out_p = pl.pallas_call(
        functools.partial(coatt_kernel, W),
        out_shape=jax.ShapeDtypeStruct((B, Cp, Wp), jnp.float32),
        grid_spec=pltpu.PrefetchScalarGridSpec(
            num_scalar_prefetch=0,
            grid=(B,),
            in_specs=[x_spec, w_spec, b_spec, s_spec],
            out_specs=o_spec,
        ),
        compiler_params=pltpu.CompilerParams(
            dimension_semantics=("parallel",),
            vmem_limit_bytes=vmem_limit,
        ),
        cost_estimate=cost,
    )(xp, wcat, bcat, stats)

    return out_p[:, :C, :W]


def coatt_ref(x, wq, bq, wk, bk, wv, bv, gamma):
    """Pure-JAX (f32) transcription of the PyTorch forward (for verification)."""
    n = x.size
    mean = jnp.mean(x)
    std = jnp.sqrt(jnp.sum((x - mean) ** 2) / (n - 1))
    xz = (x - mean) / std
    xt = jnp.transpose(xz, (0, 2, 1))                                   # (B,W,C)
    pq = jnp.einsum('oc,bcw->bow', wq, x) + bq[None, :, None]
    pk = jnp.einsum('oc,bcw->bow', wk, x) + bk[None, :, None]
    pv = jnp.einsum('oc,bcw->bow', wv, x) + bv[None, :, None]
    qe = jnp.transpose(jnp.einsum('bwc,bcv->bwv', xt, pq), (0, 2, 1))   # (B,W,W)
    ke = jnp.einsum('bwc,bcv->bwv', xt, pk)                             # (B,W,W)
    energy = jnp.einsum('bik,bkj->bij', qe, ke)
    attn = jax.nn.softmax(energy, axis=-1)
    out = jnp.einsum('bcw,biw->bci', pv, attn)
    return gamma * out + xz


if __name__ == "__main__":
    B, C, W = 2, 4, 16
    key = jax.random.PRNGKey(0)
    kx, kq, kk, kv, kbq, kbk, kbv = jax.random.split(key, 7)

    x = jax.random.normal(kx, (B, C, W), dtype=jnp.float32)

    # Deterministic parameter init (stand-in for nn.Conv1d default init).
    wq = 0.1 * jax.random.normal(kq, (C, C), dtype=jnp.float32)
    wk = 0.1 * jax.random.normal(kk, (C, C), dtype=jnp.float32)
    wv = 0.1 * jax.random.normal(kv, (C, C), dtype=jnp.float32)
    bq = 0.1 * jax.random.normal(kbq, (C,), dtype=jnp.float32)
    bk = 0.1 * jax.random.normal(kbk, (C,), dtype=jnp.float32)
    bv = 0.1 * jax.random.normal(kbv, (C,), dtype=jnp.float32)
    gamma0 = jnp.zeros((1,), dtype=jnp.float32)   # nn.Parameter(torch.zeros(1))

    # gamma = 0 (the module's initial state): residual z-score path, exact f32.
    out0 = jax.block_until_ready(coatt(x, wq, bq, wk, bk, wv, bv, gamma0))
    ref0 = coatt_ref(x, wq, bq, wk, bk, wv, bv, gamma0)
    assert out0.shape == (B, C, W), "bad output shape"
    assert jnp.allclose(out0, ref0, atol=1e-4, rtol=1e-4), "mismatch at gamma=0"

    # gamma != 0 exercises the full attention path.  Tolerance loosened because
    # the kernel intentionally uses bf16 MXU operands (f32 accumulation) plus
    # an approx reciprocal, while the reference is pure f32.
    gamma1 = jnp.array([0.5], dtype=jnp.float32)
    out1 = jax.block_until_ready(coatt(x, wq, bq, wk, bk, wv, bv, gamma1))
    ref1 = coatt_ref(x, wq, bq, wk, bk, wv, bv, gamma1)
    assert jnp.allclose(out1, ref1, atol=3e-2, rtol=3e-2), "mismatch at gamma=0.5"

    print("KERNEL_OK")
</pallas_src>

<mosaic_0001>
module attributes {stable_mosaic.version = 11 : i64} {
  func.func @coatt_kernel(%arg0: i32, %arg1: memref<1x8x128xf32, #tpu.memory_space<vmem>>, %arg2: memref<8x24xbf16, #tpu.memory_space<vmem>>, %arg3: memref<1x24xf32, #tpu.memory_space<vmem>>, %arg4: memref<3xf32, #tpu.memory_space<smem>>, %arg5: memref<1x8x128xf32, #tpu.memory_space<vmem>>) attributes {dimension_semantics = [#tpu.dimension_semantics<parallel>], iteration_bounds = array<i64: 2>, scalar_prefetch = 0 : i64, scratch_operands = 0 : i64, tpu.core_type = #tpu.core_type<tc>, window_params = [{transform_indices = @transform_0, window_bounds = array<i64: 1, 8, 128>}, {pipeline_mode = #tpu.pipeline_mode<synchronous>, transform_indices = @transform_1, window_bounds = array<i64: 8, 24>}, {pipeline_mode = #tpu.pipeline_mode<synchronous>, transform_indices = @transform_2, window_bounds = array<i64: 1, 24>}, {transform_indices = @transform_3, window_bounds = array<i64: 3>}, {transform_indices = @transform_4, window_bounds = array<i64: 1, 8, 128>}]} {
    %c0 = arith.constant 0 : index
    %0 = memref.load %arg4[%c0] : memref<3xf32, #tpu.memory_space<smem>>
    %c1 = arith.constant 1 : index
    %1 = memref.load %arg4[%c1] : memref<3xf32, #tpu.memory_space<smem>>
    %c2 = arith.constant 2 : index
    %2 = memref.load %arg4[%c2] : memref<3xf32, #tpu.memory_space<smem>>
    %c0_0 = arith.constant 0 : index
    %c0_1 = arith.constant 0 : index
    %c0_2 = arith.constant 0 : index
    %3 = vector.load %arg1[%c0_0, %c0_1, %c0_2] : memref<1x8x128xf32, #tpu.memory_space<vmem>>, vector<1x8x128xf32>
    %4 = vector.shape_cast %3 : vector<1x8x128xf32> to vector<8x128xf32>
    %5 = tpu.transpose %4, [1, 0] : vector<8x128xf32> -> vector<128x8xf32>
    %6 = vector.broadcast %0 : f32 to vector<8x128xf32>
    %7 = arith.subf %4, %6 : vector<8x128xf32>
    %8 = vector.broadcast %1 : f32 to vector<8x128xf32>
    %9 = arith.mulf %7, %8 : vector<8x128xf32>
    %10 = vector.broadcast %0 : f32 to vector<128x8xf32>
    %11 = arith.subf %5, %10 : vector<128x8xf32>
    %12 = vector.broadcast %1 : f32 to vector<128x8xf32>
    %13 = arith.mulf %11, %12 : vector<128x8xf32>
    %14 = tpu.iota {dimensions = array<i32: 1>} : vector<1x128xi32>
    %c16_i32 = arith.constant 16 : i32
    %15 = vector.broadcast %c16_i32 : i32 to vector<1x128xi32>
    %16 = arith.cmpi slt, %14, %15 : vector<1x128xi32>
    %17 = tpu.iota {dimensions = array<i32: 0>} : vector<128x1xi32>
    %c16_i32_3 = arith.constant 16 : i32
    %18 = vector.broadcast %c16_i32_3 : i32 to vector<128x1xi32>
    %19 = arith.cmpi slt, %17, %18 : vector<128x1xi32>
    %cst = arith.constant 0.000000e+00 : f32
    %20 = vector.shape_cast %16 : vector<1x128xi1> to vector<1x128xi1>
    %21 = vector.broadcast %20 : vector<1x128xi1> to vector<8x128xi1>
    %22 = vector.broadcast %cst : f32 to vector<8x128xf32>
    %23 = arith.select %21, %9, %22 : vector<8x128xi1>, vector<8x128xf32>
    %cst_4 = arith.constant 0.000000e+00 : f32
    %24 = vector.shape_cast %19 : vector<128x1xi1> to vector<128x1xi1>
    %25 = vector.broadcast %24 : vector<128x1xi1> to vector<128x8xi1>
    %26 = vector.broadcast %cst_4 : f32 to vector<128x8xf32>
    %27 = arith.select %25, %13, %26 : vector<128x8xi1>, vector<128x8xf32>
    %28 = arith.truncf %5 : vector<128x8xf32> to vector<128x8xbf16>
    %c0_5 = arith.constant 0 : index
    %c0_6 = arith.constant 0 : index
    %29 = vector.load %arg2[%c0_5, %c0_6] : memref<8x24xbf16, #tpu.memory_space<vmem>>, vector<8x24xbf16>
    %cst_7 = arith.constant dense<0.000000e+00> : vector<128x24xf32>
    %30 = tpu.matmul %28, %29, %cst_7 {dimension_numbers = #tpu.dot_dimension_numbers<[1], [0], [0], [1], [0, 0, 1, 1], [], []>} : vector<128x8xbf16>, vector<8x24xbf16>, vector<128x24xf32> -> vector<128x24xf32>
    %c0_8 = arith.constant 0 : index
    %c0_9 = arith.constant 0 : index
    %31 = vector.load %arg3[%c0_8, %c0_9] : memref<1x24xf32, #tpu.memory_space<vmem>>, vector<1x24xf32>
    %32 = vector.broadcast %31 : vector<1x24xf32> to vector<128x24xf32>
    %33 = arith.addf %30, %32 : vector<128x24xf32>
    %34 = vector.extract_strided_slice %33 {offsets = [0, 0], sizes = [128, 8], strides = [1, 1]} : vector<128x24xf32> to vector<128x8xf32>
    %35 = vector.extract_strided_slice %33 {offsets = [0, 8], sizes = [128, 8], strides = [1, 1]} : vector<128x24xf32> to vector<128x8xf32>
    %36 = vector.extract_strided_slice %33 {offsets = [0, 16], sizes = [128, 8], strides = [1, 1]} : vector<128x24xf32> to vector<128x8xf32>
    %37 = arith.truncf %23 : vector<8x128xf32> to vector<8x128xbf16>
    %38 = arith.truncf %27 : vector<128x8xf32> to vector<128x8xbf16>
    %cst_10 = arith.constant dense<0.000000e+00> : vector<8x8xf32>
    %39 = tpu.matmul %37, %38, %cst_10 {dimension_numbers = #tpu.dot_dimension_numbers<[1], [0], [0], [1], [0, 0, 1, 1], [], []>} : vector<8x128xbf16>, vector<128x8xbf16>, vector<8x8xf32> -> vector<8x8xf32>
    %40 = tpu.transpose %35, [1, 0] : vector<128x8xf32> -> vector<8x128xf32>
    %41 = arith.truncf %39 : vector<8x8xf32> to vector<8x8xbf16>
    %42 = arith.truncf %40 : vector<8x128xf32> to vector<8x128xbf16>
    %cst_11 = arith.constant dense<0.000000e+00> : vector<8x128xf32>
    %43 = tpu.matmul %41, %42, %cst_11 {dimension_numbers = #tpu.dot_dimension_numbers<[1], [0], [0], [1], [0, 0, 1, 1], [], []>} : vector<8x8xbf16>, vector<8x128xbf16>, vector<8x128xf32> -> vector<8x128xf32>
    %44 = arith.truncf %34 : vector<128x8xf32> to vector<128x8xbf16>
    %45 = arith.truncf %43 : vector<8x128xf32> to vector<8x128xbf16>
    %cst_12 = arith.constant dense<0.000000e+00> : vector<128x128xf32>
    %46 = tpu.matmul %44, %45, %cst_12 {dimension_numbers = #tpu.dot_dimension_numbers<[1], [0], [0], [1], [0, 0, 1, 1], [], []>} : vector<128x8xbf16>, vector<8x128xbf16>, vector<128x128xf32> -> vector<128x128xf32>
    %cst_13 = arith.constant -1.000000e+30 : f32
    %47 = vector.shape_cast %16 : vector<1x128xi1> to vector<1x128xi1>
    %48 = vector.broadcast %47 : vector<1x128xi1> to vector<128x128xi1>
    %49 = vector.broadcast %cst_13 : f32 to vector<128x128xf32>
    %50 = arith.select %48, %46, %49 : vector<128x128xi1>, vector<128x128xf32>
    %cst_14 = arith.constant dense<0xFF800000> : vector<128xf32>
    %51 = vector.multi_reduction <maximumf>, %50, %cst_14 [1] : vector<128x128xf32> to vector<128xf32>
    %52 = vector.shape_cast %51 : vector<128xf32> to vector<128x1xf32>
    %53 = vector.broadcast %52 : vector<128x1xf32> to vector<128x128xf32>
    %54 = arith.subf %50, %53 : vector<128x128xf32>
    %55 = math.exp %54 : vector<128x128xf32>
    %cst_15 = arith.constant dense<0.000000e+00> : vector<128xf32>
    %56 = vector.multi_reduction <add>, %55, %cst_15 [1] : vector<128x128xf32> to vector<128xf32>
    %57 = vector.shape_cast %56 : vector<128xf32> to vector<128x1xf32>
    %58 = tpu.reciprocal %57 {approx = true} : vector<128x1xf32> -> vector<128x1xf32>
    %59 = vector.broadcast %58 : vector<128x1xf32> to vector<128x128xf32>
    %60 = arith.mulf %55, %59 : vector<128x128xf32>
    %61 = arith.truncf %60 : vector<128x128xf32> to vector<128x128xbf16>
    %62 = arith.truncf %36 : vector<128x8xf32> to vector<128x8xbf16>
    %cst_16 = arith.constant dense<0.000000e+00> : vector<128x8xf32>
    %63 = tpu.matmul %61, %62, %cst_16 {dimension_numbers = #tpu.dot_dimension_numbers<[1], [0], [0], [1], [0, 0, 1, 1], [], []>} : vector<128x128xbf16>, vector<128x8xbf16>, vector<128x8xf32> -> vector<128x8xf32>
    %64 = vector.broadcast %2 : f32 to vector<128x8xf32>
    %65 = arith.mulf %64, %63 : vector<128x8xf32>
    %66 = arith.addf %65, %27 : vector<128x8xf32>
    %67 = tpu.transpose %66, [1, 0] : vector<128x8xf32> -> vector<8x128xf32>
    %c0_17 = arith.constant 0 : index
    %c0_18 = arith.constant 0 : index
    %c0_19 = arith.constant 0 : index
    %68 = vector.load %arg5[%c0_17, %c0_18, %c0_19] : memref<1x8x128xf32, #tpu.memory_space<vmem>>, vector<1x8x128xf32>
    %69 = vector.shape_cast %68 : vector<1x8x128xf32> to vector<8x128xf32>
    %70 = vector.shape_cast %67 : vector<8x128xf32> to vector<1x8x128xf32>
    tpu.vector_store %arg5[%c0_17, %c0_18, %c0_19], %70 {strides = array<i32>} : memref<1x8x128xf32, #tpu.memory_space<vmem>>, vector<1x8x128xf32>,
    return
  }
  func.func @transform_0(%arg0: i32) -> (i32, i32, i32) {
    %c0_i32 = arith.constant 0 : i32
    %c0_i32_0 = arith.constant 0 : i32
    %c0_i32_1 = arith.constant 0 : i32
    return %arg0, %c0_i32, %c0_i32_0 : i32, i32, i32
  }
  func.func @transform_1(%arg0: i32) -> (i32, i32) {
    %c0_i32 = arith.constant 0 : i32
    %c0_i32_0 = arith.constant 0 : i32
    %c0_i32_1 = arith.constant 0 : i32
    return %c0_i32, %c0_i32_0 : i32, i32
  }
  func.func @transform_2(%arg0: i32) -> (i32, i32) {
    %c0_i32 = arith.constant 0 : i32
    %c0_i32_0 = arith.constant 0 : i32
    %c0_i32_1 = arith.constant 0 : i32
    return %c0_i32, %c0_i32_0 : i32, i32
  }
  func.func @transform_3(%arg0: i32) -> i32 {
    %c0_i32 = arith.constant 0 : i32
    %c0_i32_0 = arith.constant 0 : i32
    return %c0_i32 : i32
  }
  func.func @transform_4(%arg0: i32) -> (i32, i32, i32) {
    %c0_i32 = arith.constant 0 : i32
    %c0_i32_0 = arith.constant 0 : i32
    %c0_i32_1 = arith.constant 0 : i32
    return %arg0, %c0_i32, %c0_i32_0 : i32, i32, i32
  }
}

</mosaic_0001>

<llo_original>
// kernel: coatt.1
$region0: #{coatt.1}
  #allocation0 [shape = 'u32[]', space=smem, size = 0x4, offset = 0x4, fixed_abs, tag = 'smem constant byte address 0x4 - core index']
  #allocation1 [shape = 'u32[144,128]{1,0:T(1,128)}', space=vmem, size = 0x12000, scoped, tag = 'internal scratch']
  %s0 = inlined_call_operand.vmem [shape: f32[2,8,128], index: 0, kind: input, shape index: {}]
  %s1 = inlined_call_operand.vmem [shape: bf16[8,24], index: 1, kind: input, shape index: {}]
  %s2 = inlined_call_operand.vmem [shape: f32[1,24], index: 2, kind: input, shape index: {}]
  %s3 = inlined_call_operand.vmem [shape: f32[3], index: 3, kind: input, shape index: {}]
  %s4 = inlined_call_operand.vmem [shape: f32[2,8,128], index: 4, kind: output, shape index: {}]
  %s5 = sld [smem:[#allocation0]]
  $region53: #{coatt.1} parent=0
    _
  %s7 = ssub.s32 1, %s5
  %s8 = scalar_select 0, %s7, %s5
  $region1: #{coatt.1} parent=0
    #allocation2 [shape = 'u8[512]{0}', space=smem, size = 0x200, scoped, tag = 'input window, operand 3, single buffered']
    #allocation3 [shape = 's32[2]{0}', space=sflag, size = 0x8, scoped, tag = 'scoped memory for coatt.1']
    %9 = vsyncpa [#allocation3], 0
    loop: start=0, step=1, limit=4
    $region2: #{coatt.1} parent=1 // loop_pre_header
      _
    $region3: #{coatt.1} parent=1 // loop_header
      %s11 = sphi 0, %s15
      %p12 = scmp.ge.s32.totalorder %s11, 4
      %s21 = sphi 0, %s23
      %s24 = sphi 0, %s21
      %s25 = sphi 0, %s24
      %s41 = sphi 0, %s25
      %s45 = sphi 0, %s45
      %s47 = sphi 0, %s45
      %s48 = sphi 0, %s47
      %s62 = sphi 0, %s48
      %s66 = sphi 0, %s66
      %s68 = sphi 0, %s66
      %s69 = sphi 0, %s68
      %s83 = sphi 0, %s69
      %s87 = sphi 0, %s87
      %s89 = sphi 0, %s87
      %s90 = sphi 0, %s89
      %s104 = sphi 0, %s90
      %s110 = sphi 0, %s112
      %s113 = sphi 0, %s110
      %s114 = sphi 0, %s113
      %s130 = sphi 0, %s114
    $region4: #{coatt.1} parent=1 // loop_header_branch
      %14 = sbr.rel (%p12) target = $region8
    $region5: #{coatt.1} parent=1 // loop_body
      %s16 = ssub.s32 %s11, 1
      %s17 = ssub.s32 %s11, 2
      %s18 = sadd.s32 %s11, 1
      %s19 = ssub.s32 %s11, %s18
      %p20 = scmp.eq.s32.totalorder %s19, 0
      %s22 = sadd.s32 %s21, 1
      %s23 = scalar_select %p20, %s21, %s22
      %p26 = pneg %p20
      %p27 = scmp.eq.s32.totalorder %s11, 1
      %p28 = por %p26, %p27
      %p29 = scmp.ne.s32.totalorder %s21, %s24
      %p30 = scmp.eq.s32.totalorder %s11, 0
      %p31 = por %p29, %p30
      %p32 = scmp.ne.s32.totalorder %s21, %s24
      %p33 = scmp.eq.s32.totalorder %s16, 1
      %p34 = por %p32, %p33
      %p35 = scmp.ne.s32.totalorder %s24, %s25
      %p36 = scmp.eq.s32.totalorder %s16, 0
      %p37 = por %p35, %p36
      %p38 = scmp.ne.s32.totalorder %s24, %s25
      %p39 = scmp.eq.s32.totalorder %s17, 1
      %p40 = por %p38, %p39
      %p42 = scmp.ne.s32.totalorder %s25, %s41
      %p43 = scmp.eq.s32.totalorder %s17, 0
      %p44 = por %p42, %p43
      %s46 = sadd.s32 %s45, 1
      %p49 = scmp.eq.s32.totalorder %s11, 1
      %p50 = scmp.ne.s32.totalorder %s45, %s47
      %p51 = scmp.eq.s32.totalorder %s11, 0
      %p52 = por %p50, %p51
      %p53 = scmp.ne.s32.totalorder %s45, %s47
      %p54 = scmp.eq.s32.totalorder %s16, 1
      %p55 = por %p53, %p54
      %p56 = scmp.ne.s32.totalorder %s47, %s48
      %p57 = scmp.eq.s32.totalorder %s16, 0
      %p58 = por %p56, %p57
      %p59 = scmp.ne.s32.totalorder %s47, %s48
      %p60 = scmp.eq.s32.totalorder %s17, 1
      %p61 = por %p59, %p60
      %p63 = scmp.ne.s32.totalorder %s48, %s62
      %p64 = scmp.eq.s32.totalorder %s17, 0
      %p65 = por %p63, %p64
      %s67 = sadd.s32 %s66, 1
      %p70 = scmp.eq.s32.totalorder %s11, 1
      %p71 = scmp.ne.s32.totalorder %s66, %s68
      %p72 = scmp.eq.s32.totalorder %s11, 0
      %p73 = por %p71, %p72
      %p74 = scmp.ne.s32.totalorder %s66, %s68
      %p75 = scmp.eq.s32.totalorder %s16, 1
      %p76 = por %p74, %p75
      %p77 = scmp.ne.s32.totalorder %s68, %s69
      %p78 = scmp.eq.s32.totalorder %s16, 0
      %p79 = por %p77, %p78
      %p80 = scmp.ne.s32.totalorder %s68, %s69
      %p81 = scmp.eq.s32.totalorder %s17, 1
      %p82 = por %p80, %p81
      %p84 = scmp.ne.s32.totalorder %s69, %s83
      %p85 = scmp.eq.s32.totalorder %s17, 0
      %p86 = por %p84, %p85
      %s88 = sadd.s32 %s87, 1
      %p91 = scmp.eq.s32.totalorder %s11, 1
      %p92 = scmp.ne.s32.totalorder %s87, %s89
      %p93 = scmp.eq.s32.totalorder %s11, 0
      %p94 = por %p92, %p93
      %p95 = scmp.ne.s32.totalorder %s87, %s89
      %p96 = scmp.eq.s32.totalorder %s16, 1
      %p97 = por %p95, %p96
      %p98 = scmp.ne.s32.totalorder %s89, %s90
      %p99 = scmp.eq.s32.totalorder %s16, 0
      %p100 = por %p98, %p99
      %p101 = scmp.ne.s32.totalorder %s89, %s90
      %p102 = scmp.eq.s32.totalorder %s17, 1
      %p103 = por %p101, %p102
      %p105 = scmp.ne.s32.totalorder %s90, %s104
      %p106 = scmp.eq.s32.totalorder %s17, 0
      %p107 = por %p105, %p106
      %s108 = ssub.s32 %s11, %s18
      %p109 = scmp.eq.s32.totalorder %s108, 0
      %s111 = sadd.s32 %s110, 1
      %s112 = scalar_select %p109, %s110, %s111
      %p115 = pneg %p109
      %p116 = scmp.eq.s32.totalorder %s11, 1
      %p117 = por %p115, %p116
      %p118 = scmp.ne.s32.totalorder %s110, %s113
      %p119 = scmp.eq.s32.totalorder %s11, 0
      %p120 = por %p118, %p119
      %p121 = scmp.ne.s32.totalorder %s110, %s113
      %p122 = scmp.eq.s32.totalorder %s16, 1
      %p123 = por %p121, %p122
      %p124 = scmp.ne.s32.totalorder %s113, %s114
      %p125 = scmp.eq.s32.totalorder %s16, 0
      %p126 = por %p124, %p125
      %p127 = scmp.ne.s32.totalorder %s113, %s114
      %p128 = scmp.eq.s32.totalorder %s17, 1
      %p129 = por %p127, %p128
      %p131 = scmp.ne.s32.totalorder %s114, %s130
      %p132 = scmp.eq.s32.totalorder %s17, 0
      %p133 = por %p131, %p132
      %p134 = scmp.le.s32.totalorder 1, %s11
      %p135 = scmp.lt.s32.totalorder %s11, 3
      %p136 = pnand %p134, %p135
      %p137 = pneg %p136
      // Predicated region
      $region9: #{coatt.1} parent=5 // pred_check
        _
      $region10: #{coatt.1} parent=5 // pred_check_branch
        %139 = sbr.rel (%p136) target = $region12
      $region11: #{coatt.1} parent=5 // pred_region
        %s140 = ssub.s32 %s11, 1
        // Predicated region
        $region13: #{coatt.1} parent=11 // pred_check
          %p141 = pneg %p58
        $region14: #{coatt.1} parent=11 // pred_check_branch
          %143 = sbr.rel (%p141) target = $region16
        $region15: #{coatt.1} parent=11 // pred_region
          _
        $region16: #{coatt.1} parent=11 // pred_fallthru
          _
        // Predicated region
        $region17: #{coatt.1} parent=11 // pred_check
          %p144 = pneg %p79
        $region18: #{coatt.1} parent=11 // pred_check_branch
          %146 = sbr.rel (%p144) target = $region20
        $region19: #{coatt.1} parent=11 // pred_region
          _
        $region20: #{coatt.1} parent=11 // pred_fallthru
          _
        // Predicated region
        $region21: #{coatt.1} parent=11 // pred_check
          %p147 = pneg %p100
        $region22: #{coatt.1} parent=11 // pred_check_branch
          %149 = sbr.rel (%p147) target = $region24
        $region23: #{coatt.1} parent=11 // pred_region
          %s151 = ssub.s32 16, 16
          %152 = vsyncadd [#allocation3], %s151
          %s154 = sshll.u32 %s3, 4
          %s155 = int_to_ptr.vmem [resolvable:$true] %s154
          %157 = dma.vmem_to_smem %s155, 16, [#allocation2], [#allocation3]
        $region24: #{coatt.1} parent=11 // pred_fallthru
          _
      $region12: #{coatt.1} parent=5 // pred_fallthru
        _
      %p158 = scmp.lt.s32.totalorder %s11, 2
      // Predicated region
      $region25: #{coatt.1} parent=5 // pred_check
        %p159 = pneg %p158
      $region26: #{coatt.1} parent=5 // pred_check_branch
        %161 = sbr.rel (%p159) target = $region28
      $region27: #{coatt.1} parent=5 // pred_region
        // Predicated region
        $region29: #{coatt.1} parent=27 // pred_check
          %p162 = pneg %p31
        $region30: #{coatt.1} parent=27 // pred_check_branch
          %164 = sbr.rel (%p162) target = $region32
        $region31: #{coatt.1} parent=27 // pred_region
          %p165 = scmp.lt.s32.totalorder %s11, 1
          %s166 = scalar_select %p165, %s11, 1
          %s167 = smul.addr %s166, 8
          %s168 = scalar_lea.vmem %s0, %s167
        $region32: #{coatt.1} parent=27 // pred_fallthru
          _
      $region28: #{coatt.1} parent=5 // pred_fallthru
        _
      %p169 = scmp.le.s32.totalorder 1, %s11
      %p170 = scmp.lt.s32.totalorder %s11, 3
      %p171 = pnand %p169, %p170
      %p172 = pneg %p171
      // Predicated region
      $region33: #{coatt.1} parent=5 // pred_check
        _
      $region34: #{coatt.1} parent=5 // pred_check_branch
        %174 = sbr.rel (%p171) target = $region36
      $region35: #{coatt.1} parent=5 // pred_region
        %s175 = ssub.s32 %s11, 1
        // Predicated region
        $region37: #{coatt.1} parent=35 // pred_check
          %p176 = pneg %p100
        $region38: #{coatt.1} parent=35 // pred_check_branch
          %178 = sbr.rel (%p176) target = $region40
        $region39: #{coatt.1} parent=35 // pred_region
          %179 = dma.done [#allocation3], 16
        $region40: #{coatt.1} parent=35 // pred_fallthru
          _
        %180 = sfence
        %p181 = scmp.lt.s32.totalorder %s16, 1
        %s182 = scalar_select %p181, %s16, 1
        %s183 = smul.addr %s182, 8
        %s184 = scalar_lea.vmem %s0, %s183
        %p185 = pneg %p37
        %p186 = pneg %p34
        %p187 = pneg %p58
        %p188 = pneg %p55
        %p189 = pneg %p79
        %p190 = pneg %p76
        %p191 = pneg %p100
        %p192 = pneg %p97
        %p193 = pneg %p126
        %p194 = pneg %p123
        %p195 = scmp.lt.s32.totalorder %s16, 1
        %s196 = scalar_select %p195, %s16, 1
        %s197 = smul.addr %s196, 8
        %s198 = scalar_lea.vmem %s4, %s197
        %p199 = scmp.lt.s32.totalorder %s16, 1
        %s200 = scalar_select %p199, %s16, 1
        %s201 = smul.addr %s200, 8
        %s202 = scalar_lea.vmem %s0, %s201
        %p203 = scmp.lt.s32.totalorder %s16, 1
        %s204 = scalar_select %p203, %s16, 1
        %s205 = smul.addr %s204, 8
        %s206 = scalar_lea.vmem %s4, %s205
        %s208 = sld [smem:[#allocation2]]
        %s209 = sld [smem:[#allocation2 + $0x1]]
        %s210 = sld [smem:[#allocation2 + $0x2]]
        %v211 = vld [vmem:[%s202] sm:$0xff]
        %212 = vxpose.xlu0.b32.start [1/16] %v211, 128
        %213 = vxpose.xlu0.b32.cont [2/16] 0.0, 128
        %214 = vxpose.xlu0.b32.cont [3/16] 0.0, 128
        %215 = vxpose.xlu0.b32.cont [4/16] 0.0, 128
        %216 = vxpose.xlu0.b32.cont [5/16] 0.0, 128
        %217 = vxpose.xlu0.b32.cont [6/16] 0.0, 128
        %218 = vxpose.xlu0.b32.cont [7/16] 0.0, 128
        %219 = vxpose.xlu0.b32.cont [8/16] 0.0, 128
        %220 = vxpose.xlu0.b32.cont [9/16] 0.0, 128
        %221 = vxpose.xlu0.b32.cont [10/16] 0.0, 128
        %222 = vxpose.xlu0.b32.cont [11/16] 0.0, 128
        %223 = vxpose.xlu0.b32.cont [12/16] 0.0, 128
        %224 = vxpose.xlu0.b32.cont [13/16] 0.0, 128
        %225 = vxpose.xlu0.b32.cont [14/16] 0.0, 128
        %226 = vxpose.xlu0.b32.cont [15/16] 0.0, 128
        %227 = vxpose.xlu0.b32.end [16/16] 0.0, 128
        %v228 = vpop.trf.xlu0
        %v229 = vpop.trf.xlu0
        %v230 = vpop.trf.xlu0
        %v231 = vpop.trf.xlu0
        %v232 = vpop.trf.xlu0
        %v233 = vpop.trf.xlu0
        %v234 = vpop.trf.xlu0
        %v235 = vpop.trf.xlu0
        %v236 = vpop.trf.xlu0
        %v237 = vpop.trf.xlu0
        %v238 = vpop.trf.xlu0
        %v239 = vpop.trf.xlu0
        %v240 = vpop.trf.xlu0
        %v241 = vpop.trf.xlu0
        %v242 = vpop.trf.xlu0
        %v243 = vpop.trf.xlu0
        %v244 = vstv %s208
        %v245 = vsub.f32 %v211, %v244
        %v246 = vstv %s209
        %v247 = vmul.f32 %v245, %v246
        %v248 = vsub.f32 %v228, %v244
        %v249 = vsub.f32 %v229, %v244
        %v250 = vsub.f32 %v230, %v244
        %v251 = vsub.f32 %v231, %v244
        %v252 = vsub.f32 %v232, %v244
        %v253 = vsub.f32 %v233, %v244
        %v254 = vsub.f32 %v234, %v244
        %v255 = vsub.f32 %v235, %v244
        %v256 = vsub.f32 %v236, %v244
        %v257 = vsub.f32 %v237, %v244
        %v258 = vsub.f32 %v238, %v244
        %v259 = vsub.f32 %v239, %v244
        %v260 = vsub.f32 %v240, %v244
        %v261 = vsub.f32 %v241, %v244
        %v262 = vsub.f32 %v242, %v244
        %v263 = vsub.f32 %v243, %v244
        %v264 = vmul.f32 %v248, %v246
        %v265 = vmul.f32 %v249, %v246
        %v266 = vmul.f32 %v250, %v246
        %v267 = vmul.f32 %v251, %v246
        %v268 = vmul.f32 %v252, %v246
        %v269 = vmul.f32 %v253, %v246
        %v270 = vmul.f32 %v254, %v246
        %v271 = vmul.f32 %v255, %v246
        %v272 = vmul.f32 %v256, %v246
        %v273 = vmul.f32 %v257, %v246
        %v274 = vmul.f32 %v258, %v246
        %v275 = vmul.f32 %v259, %v246
        %v276 = vmul.f32 %v260, %v246
        %v277 = vmul.f32 %v261, %v246
        %v278 = vmul.f32 %v262, %v246
        %v279 = vmul.f32 %v263, %v246
        %v280 = vlaneseq
        %v281 = vand.u32 %v280, 127
        %vm282 = vcmp.lt.s32.totalorder %v281, 16
        %v283 = vlaneseq
        %v284 = vshrl.u32 %v283, 7
        %v285 = vadd.s32 %v284, 8
        %v286 = vadd.s32 %v284, 16
        %v287 = vadd.s32 %v284, 24
        %v288 = vadd.s32 %v284, 32
        %v289 = vadd.s32 %v284, 40
        %v290 = vadd.s32 %v284, 48
        %v291 = vadd.s32 %v284, 56
        %v292 = vadd.s32 %v284, 64
        %v293 = vadd.s32 %v284, 72
        %v294 = vadd.s32 %v284, 80
        %v295 = vadd.s32 %v284, 88
        %v296 = vadd.s32 %v284, 96
        %v297 = vadd.s32 %v284, 104
        %v298 = vadd.s32 %v284, 112
        %v299 = vadd.s32 %v284, 120
        %vm300 = vcmp.lt.s32.totalorder %v284, 16
        %vm301 = vcmp.lt.s32.totalorder %v285, 16
        %vm302 = vcmp.lt.s32.totalorder %v286, 16
        %vm303 = vcmp.lt.s32.totalorder %v287, 16
        %vm304 = vcmp.lt.s32.totalorder %v288, 16
        %vm305 = vcmp.lt.s32.totalorder %v289, 16
        %vm306 = vcmp.lt.s32.totalorder %v290, 16
        %vm307 = vcmp.lt.s32.totalorder %v291, 16
        %vm308 = vcmp.lt.s32.totalorder %v292, 16
        %vm309 = vcmp.lt.s32.totalorder %v293, 16
        %vm310 = vcmp.lt.s32.totalorder %v294, 16
        %vm311 = vcmp.lt.s32.totalorder %v295, 16
        %vm312 = vcmp.lt.s32.totalorder %v296, 16
        %vm313 = vcmp.lt.s32.totalorder %v297, 16
        %vm314 = vcmp.lt.s32.totalorder %v298, 16
        %vm315 = vcmp.lt.s32.totalorder %v299, 16
        %v316 = vsel %vm282, 1, 0
        %vm317 = vcmp.eq.s32.totalorder %v316, 1
        %v318 = vsel %vm317, %v247, 0.0
        %v319 = vsel %vm300, 1, 0
        %v320 = vsel %vm301, 1, 0
        %v321 = vsel %vm302, 1, 0
        %v322 = vsel %vm303, 1, 0
        %v323 = vsel %vm304, 1, 0
        %v324 = vsel %vm305, 1, 0
        %v325 = vsel %vm306, 1, 0
        %v326 = vsel %vm307, 1, 0
        %v327 = vsel %vm308, 1, 0
        %v328 = vsel %vm309, 1, 0
        %v329 = vsel %vm310, 1, 0
        %v330 = vsel %vm311, 1, 0
        %v331 = vsel %vm312, 1, 0
        %v332 = vsel %vm313, 1, 0
        %v333 = vsel %vm314, 1, 0
        %v334 = vsel %vm315, 1, 0
        %vm335 = vcmp.eq.s32.totalorder %v319, 1
        %vm336 = vcmp.eq.s32.totalorder %v320, 1
        %vm337 = vcmp.eq.s32.totalorder %v321, 1
        %vm338 = vcmp.eq.s32.totalorder %v322, 1
        %vm339 = vcmp.eq.s32.totalorder %v323, 1
        %vm340 = vcmp.eq.s32.totalorder %v324, 1
        %vm341 = vcmp.eq.s32.totalorder %v325, 1
        %vm342 = vcmp.eq.s32.totalorder %v326, 1
        %vm343 = vcmp.eq.s32.totalorder %v327, 1
        %vm344 = vcmp.eq.s32.totalorder %v328, 1
        %vm345 = vcmp.eq.s32.totalorder %v329, 1
        %vm346 = vcmp.eq.s32.totalorder %v330, 1
        %vm347 = vcmp.eq.s32.totalorder %v331, 1
        %vm348 = vcmp.eq.s32.totalorder %v332, 1
        %vm349 = vcmp.eq.s32.totalorder %v333, 1
        %vm350 = vcmp.eq.s32.totalorder %v334, 1
        %v351 = vsel %vm335, %v264, 0.0
        %v352 = vsel %vm336, %v265, 0.0
        %v353 = vsel %vm337, %v266, 0.0
        %v354 = vsel %vm338, %v267, 0.0
        %v355 = vsel %vm339, %v268, 0.0
        %v356 = vsel %vm340, %v269, 0.0
        %v357 = vsel %vm341, %v270, 0.0
        %v358 = vsel %vm342, %v271, 0.0
        %v359 = vsel %vm343, %v272, 0.0
        %v360 = vsel %vm344, %v273, 0.0
        %v361 = vsel %vm345, %v274, 0.0
        %v362 = vsel %vm346, %v275, 0.0
        %v363 = vsel %vm347, %v276, 0.0
        %v364 = vsel %vm348, %v277, 0.0
        %v365 = vsel %vm349, %v278, 0.0
        %v366 = vsel %vm350, %v279, 0.0
        %v367 = vpack.c.bf16 %v229, %v228
        %v368 = vpack.c.bf16 %v231, %v230
        %v369 = vpack.c.bf16 %v233, %v232
        %v370 = vpack.c.bf16 %v235, %v234
        %v371 = vpack.c.bf16 %v237, %v236
        %v372 = vpack.c.bf16 %v239, %v238
        %v373 = vpack.c.bf16 %v241, %v240
        %v374 = vpack.c.bf16 %v243, %v242
        %v375 = vld [vmem:[%s1] sm:$0xf]
        %v376 = vld [vmem:[%s2] sm:$0x1]
        %v378 = vlaneseq
        %v379 = vshrl.u32 %v378, 7
        %v380 = vsub.s32 0, %v379
        %v381 = vrot.slane %v376, %v380
        %vm383 = vcmask 64512
        %v385 = vsel %vm383, %v367, 0
        %v388 = vsel %vm383, %v368, 0
        %v391 = vsel %vm383, %v369, 0
        %v394 = vsel %vm383, %v370, 0
        %v397 = vsel %vm383, %v371, 0
        %v400 = vsel %vm383, %v372, 0
        %v403 = vsel %vm383, %v373, 0
        %v406 = vsel %vm383, %v374, 0
        %vm408 = vcmask 1043456
        %v410 = vsel %vm408, %v375, 0
        %412 = vmatprep.subr.bf16.mxu0 0
        %413 = vmatpush1.bf16.msra.mxu0 0
        %414 = vmatprep.subr.bf16.mxu0 0
        %415 = vmatpush1.bf16.msra.mxu0 0
        %416 = vmatprep.subr.bf16.mxu0 0
        %417 = vmatpush1.bf16.msra.mxu0 0
        %418 = vmatprep.subr.bf16.mxu0 0
        %419 = vmatpush1.bf16.msra.mxu0 0
        %420 = vmatprep.subr.bf16.mxu0 0
        %421 = vmatpush1.bf16.msra.mxu0 0
        %422 = vmatprep.subr.bf16.mxu0 0
        %423 = vmatpush1.bf16.msra.mxu0 0
        %424 = vmatprep.subr.bf16.mxu0 0
        %425 = vmatpush1.bf16.msra.mxu0 0
        %426 = vmatprep.subr.bf16.mxu0 0
        %427 = vmatpush1.bf16.msra.mxu0 %v410
        %428 = vmatprep.subr.bf16.mxu0 0
        %429 = vmatpush2.bf16.msra.mxu0 0
        %430 = vmatprep.subr.bf16.mxu0 0
        %431 = vmatpush2.bf16.msra.mxu0 0
        %432 = vmatprep.subr.bf16.mxu0 0
        %433 = vmatpush2.bf16.msra.mxu0 0
        %434 = vmatprep.subr.bf16.mxu0 0
        %435 = vmatpush2.bf16.msra.mxu0 0
        %436 = vmatprep.subr.bf16.mxu0 0
        %437 = vmatpush2.bf16.msra.mxu0 0
        %438 = vmatprep.subr.bf16.mxu0 0
        %439 = vmatpush2.bf16.msra.mxu0 0
        %440 = vmatprep.subr.bf16.mxu0 0
        %441 = vmatpush2.bf16.msra.mxu0 0
        %442 = vmatprep.subr.bf16.mxu0 0
        %443 = vmatpush2.bf16.msra.mxu0 0
        %444 = vmatprep.mubr.bf16.mxu0 0
        %445 = vmatmul.mubr.bf16.gmra.mxu0 %v385
        %v446 = vpop.f32.mrf.mxu0
        %v447 = vadd.f32 %v381, %v446
        %v448 = vpop.f32.mrf.mxu0
        %v449 = vpop.f32.mrf.mxu0
        %v450 = vadd.f32 %v381, %v449
        %v451 = vpop.f32.mrf.mxu0
        %452 = vmatprep.mubr.bf16.mxu0 0
        %453 = vmatmul.mubr.bf16.gmra.mxu0 %v388
        %v454 = vpop.f32.mrf.mxu0
        %v455 = vadd.f32 %v381, %v454
        %v456 = vpop.f32.mrf.mxu0
        %v457 = vpop.f32.mrf.mxu0
        %v458 = vadd.f32 %v381, %v457
        %v459 = vpop.f32.mrf.mxu0
        %460 = vmatprep.mubr.bf16.mxu0 0
        %461 = vmatmul.mubr.bf16.gmra.mxu0 %v391
        %v462 = vpop.f32.mrf.mxu0
        %v463 = vadd.f32 %v381, %v462
        %v464 = vpop.f32.mrf.mxu0
        %v465 = vpop.f32.mrf.mxu0
        %v466 = vadd.f32 %v381, %v465
        %v467 = vpop.f32.mrf.mxu0
        %468 = vmatprep.mubr.bf16.mxu0 0
        %469 = vmatmul.mubr.bf16.gmra.mxu0 %v394
        %v470 = vpop.f32.mrf.mxu0
        %v471 = vadd.f32 %v381, %v470
        %v472 = vpop.f32.mrf.mxu0
        %v473 = vpop.f32.mrf.mxu0
        %v474 = vadd.f32 %v381, %v473
        %v475 = vpop.f32.mrf.mxu0
        %476 = vmatprep.mubr.bf16.mxu0 0
        %477 = vmatmul.mubr.bf16.gmra.mxu0 %v397
        %v478 = vpop.f32.mrf.mxu0
        %v479 = vadd.f32 %v381, %v478
        %v480 = vpop.f32.mrf.mxu0
        %v481 = vpop.f32.mrf.mxu0
        %v482 = vadd.f32 %v381, %v481
        %v483 = vpop.f32.mrf.mxu0
        %484 = vmatprep.mubr.bf16.mxu0 0
        %485 = vmatmul.mubr.bf16.gmra.mxu0 %v400
        %v486 = vpop.f32.mrf.mxu0
        %v487 = vadd.f32 %v381, %v486
        %v488 = vpop.f32.mrf.mxu0
        %v489 = vpop.f32.mrf.mxu0
        %v490 = vadd.f32 %v381, %v489
        %v491 = vpop.f32.mrf.mxu0
        %492 = vmatprep.mubr.bf16.mxu0 0
        %493 = vmatmul.mubr.bf16.gmra.mxu0 %v403
        %v494 = vpop.f32.mrf.mxu0
        %v495 = vadd.f32 %v381, %v494
        %v496 = vpop.f32.mrf.mxu0
        %v497 = vpop.f32.mrf.mxu0
        %v498 = vadd.f32 %v381, %v497
        %v499 = vpop.f32.mrf.mxu0
        %500 = vmatprep.mubr.bf16.mxu0 0
        %501 = vmatmul.mubr.bf16.gmra.mxu0 %v406
        %v502 = vpop.f32.mrf.mxu0
        %v503 = vadd.f32 %v381, %v502
        %v504 = vpop.f32.mrf.mxu0
        %v505 = vpop.f32.mrf.mxu0
        %v506 = vadd.f32 %v381, %v505
        %v507 = vpop.f32.mrf.mxu0
        %508 = vdwg.mxu0
        %v509 = vpack.c.bf16 %v318, %v318
        %v510 = vpack.c.bf16 %v352, %v351
        %v511 = vpack.c.bf16 %v354, %v353
        %v512 = vpack.c.bf16 %v356, %v355
        %v513 = vpack.c.bf16 %v358, %v357
        %v514 = vpack.c.bf16 %v360, %v359
        %v515 = vpack.c.bf16 %v362, %v361
        %v516 = vpack.c.bf16 %v364, %v363
        %v517 = vpack.c.bf16 %v366, %v365
        %518 = vmatprep.subr.bf16.mxu0 0
        %519 = vmatpush1.bf16.msra.mxu0 %v517
        %520 = vmatprep.subr.bf16.mxu0 0
        %521 = vmatpush1.bf16.msra.mxu0 %v516
        %522 = vmatprep.subr.bf16.mxu0 0
        %523 = vmatpush1.bf16.msra.mxu0 %v515
        %524 = vmatprep.subr.bf16.mxu0 0
        %525 = vmatpush1.bf16.msra.mxu0 %v514
        %526 = vmatprep.subr.bf16.mxu0 0
        %527 = vmatpush1.bf16.msra.mxu0 %v513
        %528 = vmatprep.subr.bf16.mxu0 0
        %529 = vmatpush1.bf16.msra.mxu0 %v512
        %530 = vmatprep.subr.bf16.mxu0 0
        %531 = vmatpush1.bf16.msra.mxu0 %v511
        %532 = vmatprep.subr.bf16.mxu0 0
        %533 = vmatpush1.bf16.msra.mxu0 %v510
        %534 = vmatprep.subr.bf16.mxu0 0
        %535 = vmatpush2.bf16.msra.mxu0 0
        %536 = vmatprep.subr.bf16.mxu0 0
        %537 = vmatpush2.bf16.msra.mxu0 0
        %538 = vmatprep.subr.bf16.mxu0 0
        %539 = vmatpush2.bf16.msra.mxu0 0
        %540 = vmatprep.subr.bf16.mxu0 0
        %541 = vmatpush2.bf16.msra.mxu0 0
        %542 = vmatprep.subr.bf16.mxu0 0
        %543 = vmatpush2.bf16.msra.mxu0 0
        %544 = vmatprep.subr.bf16.mxu0 0
        %545 = vmatpush2.bf16.msra.mxu0 0
        %546 = vmatprep.subr.bf16.mxu0 0
        %547 = vmatpush2.bf16.msra.mxu0 0
        %548 = vmatprep.subr.bf16.mxu0 0
        %549 = vmatpush2.bf16.msra.mxu0 0
        %550 = vmatprep.mubr.bf16.mxu0 0
        %551 = vmatmul.mubr.bf16.gmra.mxu0 %v509
        %v552 = vpop.f32.mrf.mxu0
        %v553 = vadd.f32 0.0, %v552
        %v554 = vpop.f32.mrf.mxu0
        %v555 = vpop.f32.mrf.mxu0
        %v556 = vpop.f32.mrf.mxu0
        %557 = vdwg.mxu0
        %574 = vrot.lane.b32.xlu0 %v447, 120
        %v575 = vpop.permute.xlu0 %574
        %576 = vrot.lane.b32.xlu0 %v450, 120
        %v577 = vpop.permute.xlu0 %576
        %578 = vrot.lane.b32.xlu0 %v455, 120
        %v579 = vpop.permute.xlu0 %578
        %580 = vrot.lane.b32.xlu0 %v458, 120
        %v581 = vpop.permute.xlu0 %580
        %582 = vrot.lane.b32.xlu0 %v463, 120
        %v583 = vpop.permute.xlu0 %582
        %584 = vrot.lane.b32.xlu0 %v466, 120
        %v585 = vpop.permute.xlu0 %584
        %586 = vrot.lane.b32.xlu0 %v471, 120
        %v587 = vpop.permute.xlu0 %586
        %588 = vrot.lane.b32.xlu0 %v474, 120
        %v589 = vpop.permute.xlu0 %588
        %590 = vrot.lane.b32.xlu0 %v479, 120
        %v591 = vpop.permute.xlu0 %590
        %592 = vrot.lane.b32.xlu0 %v482, 120
        %v593 = vpop.permute.xlu0 %592
        %594 = vrot.lane.b32.xlu0 %v487, 120
        %v595 = vpop.permute.xlu0 %594
        %596 = vrot.lane.b32.xlu0 %v490, 120
        %v597 = vpop.permute.xlu0 %596
        %598 = vrot.lane.b32.xlu0 %v495, 120
        %v599 = vpop.permute.xlu0 %598
        %600 = vrot.lane.b32.xlu0 %v498, 120
        %v601 = vpop.permute.xlu0 %600
        %602 = vrot.lane.b32.xlu0 %v503, 120
        %v603 = vpop.permute.xlu0 %602
        %604 = vrot.lane.b32.xlu0 %v506, 120
        %v605 = vpop.permute.xlu0 %604
        %622 = vxpose.xlu0.b32.start [1/16] %v575, 128
        %623 = vxpose.xlu0.b32.cont [2/16] %v577, 128
        %624 = vxpose.xlu0.b32.cont [3/16] %v579, 128
        %625 = vxpose.xlu0.b32.cont [4/16] %v581, 128
        %626 = vxpose.xlu0.b32.cont [5/16] %v583, 128
        %627 = vxpose.xlu0.b32.cont [6/16] %v585, 128
        %628 = vxpose.xlu0.b32.cont [7/16] %v587, 128
        %629 = vxpose.xlu0.b32.cont [8/16] %v589, 128
        %630 = vxpose.xlu0.b32.cont [9/16] %v591, 128
        %631 = vxpose.xlu0.b32.cont [10/16] %v593, 128
        %632 = vxpose.xlu0.b32.cont [11/16] %v595, 128
        %633 = vxpose.xlu0.b32.cont [12/16] %v597, 128
        %634 = vxpose.xlu0.b32.cont [13/16] %v599, 128
        %635 = vxpose.xlu0.b32.cont [14/16] %v601, 128
        %636 = vxpose.xlu0.b32.cont [15/16] %v603, 128
        %637 = vxpose.xlu0.b32.end [16/16] %v605, 128
        %v638 = vpop.trf.xlu0
        %v639 = vpop.trf.xlu0
        %v640 = vpop.trf.xlu0
        %v641 = vpop.trf.xlu0
        %v642 = vpop.trf.xlu0
        %v643 = vpop.trf.xlu0
        %v644 = vpop.trf.xlu0
        %v645 = vpop.trf.xlu0
        %v646 = vpop.trf.xlu0
        %v647 = vpop.trf.xlu0
        %v648 = vpop.trf.xlu0
        %v649 = vpop.trf.xlu0
        %v650 = vpop.trf.xlu0
        %v651 = vpop.trf.xlu0
        %v652 = vpop.trf.xlu0
        %v653 = vpop.trf.xlu0
        %v654 = vpack.c.bf16 %v553, %v553
        %v655 = vpack.c.bf16 %v638, %v638
        %v657 = vsel %vm383, %v654, 0
        %v660 = vsel %vm408, %v655, 0
        %662 = vmatprep.subr.bf16.mxu0 0
        %663 = vmatpush1.bf16.msra.mxu0 0
        %664 = vmatprep.subr.bf16.mxu0 0
        %665 = vmatpush1.bf16.msra.mxu0 0
        %666 = vmatprep.subr.bf16.mxu0 0
        %667 = vmatpush1.bf16.msra.mxu0 0
        %668 = vmatprep.subr.bf16.mxu0 0
        %669 = vmatpush1.bf16.msra.mxu0 0
        %670 = vmatprep.subr.bf16.mxu0 0
        %671 = vmatpush1.bf16.msra.mxu0 0
        %672 = vmatprep.subr.bf16.mxu0 0
        %673 = vmatpush1.bf16.msra.mxu0 0
        %674 = vmatprep.subr.bf16.mxu0 0
        %675 = vmatpush1.bf16.msra.mxu0 0
        %676 = vmatprep.subr.bf16.mxu0 0
        %677 = vmatpush1.bf16.msra.mxu0 %v660
        %678 = vmatprep.subr.bf16.mxu0 0
        %679 = vmatpush2.bf16.msra.mxu0 0
        %680 = vmatprep.subr.bf16.mxu0 0
        %681 = vmatpush2.bf16.msra.mxu0 0
        %682 = vmatprep.subr.bf16.mxu0 0
        %683 = vmatpush2.bf16.msra.mxu0 0
        %684 = vmatprep.subr.bf16.mxu0 0
        %685 = vmatpush2.bf16.msra.mxu0 0
        %686 = vmatprep.subr.bf16.mxu0 0
        %687 = vmatpush2.bf16.msra.mxu0 0
        %688 = vmatprep.subr.bf16.mxu0 0
        %689 = vmatpush2.bf16.msra.mxu0 0
        %690 = vmatprep.subr.bf16.mxu0 0
        %691 = vmatpush2.bf16.msra.mxu0 0
        %692 = vmatprep.subr.bf16.mxu0 0
        %693 = vmatpush2.bf16.msra.mxu0 0
        %694 = vmatprep.mubr.bf16.mxu0 0
        %695 = vmatmul.mubr.bf16.gmra.mxu0 %v657
        %v696 = vpop.f32.mrf.mxu0
        %v697 = vadd.f32 0.0, %v696
        %v698 = vpop.f32.mrf.mxu0
        %v699 = vpop.f32.mrf.mxu0
        %v700 = vpop.f32.mrf.mxu0
        %701 = vdwg.mxu0
        %v702 = vpack.c.bf16 %v450, %v447
        %v703 = vpack.c.bf16 %v458, %v455
        %v704 = vpack.c.bf16 %v466, %v463
        %v705 = vpack.c.bf16 %v474, %v471
        %v706 = vpack.c.bf16 %v482, %v479
        %v707 = vpack.c.bf16 %v490, %v487
        %v708 = vpack.c.bf16 %v498, %v495
        %v709 = vpack.c.bf16 %v506, %v503
        %v710 = vpack.c.bf16 %v697, %v697
        %v712 = vsel %vm383, %v702, 0
        %v715 = vsel %vm383, %v703, 0
        %v718 = vsel %vm383, %v704, 0
        %v721 = vsel %vm383, %v705, 0
        %v724 = vsel %vm383, %v706, 0
        %v727 = vsel %vm383, %v707, 0
        %v730 = vsel %vm383, %v708, 0
        %v733 = vsel %vm383, %v709, 0
        %v736 = vsel %vm408, %v710, 0
        %738 = vmatprep.subr.bf16.mxu0 0
        %739 = vmatpush1.bf16.msra.mxu0 0
        %740 = vmatprep.subr.bf16.mxu0 0
        %741 = vmatpush1.bf16.msra.mxu0 0
        %742 = vmatprep.subr.bf16.mxu0 0
        %743 = vmatpush1.bf16.msra.mxu0 0
        %744 = vmatprep.subr.bf16.mxu0 0
        %745 = vmatpush1.bf16.msra.mxu0 0
        %746 = vmatprep.subr.bf16.mxu0 0
        %747 = vmatpush1.bf16.msra.mxu0 0
        %748 = vmatprep.subr.bf16.mxu0 0
        %749 = vmatpush1.bf16.msra.mxu0 0
        %750 = vmatprep.subr.bf16.mxu0 0
        %751 = vmatpush1.bf16.msra.mxu0 0
        %752 = vmatprep.subr.bf16.mxu0 0
        %753 = vmatpush1.bf16.msra.mxu0 %v736
        %754 = vmatprep.subr.bf16.mxu0 0
        %755 = vmatpush2.bf16.msra.mxu0 0
        %756 = vmatprep.subr.bf16.mxu0 0
        %757 = vmatpush2.bf16.msra.mxu0 0
        %758 = vmatprep.subr.bf16.mxu0 0
        %759 = vmatpush2.bf16.msra.mxu0 0
        %760 = vmatprep.subr.bf16.mxu0 0
        %761 = vmatpush2.bf16.msra.mxu0 0
        %762 = vmatprep.subr.bf16.mxu0 0
        %763 = vmatpush2.bf16.msra.mxu0 0
        %764 = vmatprep.subr.bf16.mxu0 0
        %765 = vmatpush2.bf16.msra.mxu0 0
        %766 = vmatprep.subr.bf16.mxu0 0
        %767 = vmatpush2.bf16.msra.mxu0 0
        %768 = vmatprep.subr.bf16.mxu0 0
        %769 = vmatpush2.bf16.msra.mxu0 0
        %770 = vmatprep.mubr.bf16.mxu0 0
        %771 = vmatmul.mubr.bf16.gmra.mxu0 %v712
        %v772 = vpop.f32.mrf.mxu0
        %v773 = vadd.f32 0.0, %v772
        %v774 = vpop.f32.mrf.mxu0
        %v775 = vpop.f32.mrf.mxu0
        %v776 = vadd.f32 0.0, %v775
        %v777 = vpop.f32.mrf.mxu0
        %778 = vmatprep.mubr.bf16.mxu0 0
        %779 = vmatmul.mubr.bf16.gmra.mxu0 %v715
        %v780 = vpop.f32.mrf.mxu0
        %v781 = vadd.f32 0.0, %v780
        %v782 = vpop.f32.mrf.mxu0
        %v783 = vpop.f32.mrf.mxu0
        %v784 = vadd.f32 0.0, %v783
        %v785 = vpop.f32.mrf.mxu0
        %786 = vmatprep.mubr.bf16.mxu0 0
        %787 = vmatmul.mubr.bf16.gmra.mxu0 %v718
        %v788 = vpop.f32.mrf.mxu0
        %v789 = vadd.f32 0.0, %v788
        %v790 = vpop.f32.mrf.mxu0
        %v791 = vpop.f32.mrf.mxu0
        %v792 = vadd.f32 0.0, %v791
        %v793 = vpop.f32.mrf.mxu0
        %794 = vmatprep.mubr.bf16.mxu0 0
        %795 = vmatmul.mubr.bf16.gmra.mxu0 %v721
        %v796 = vpop.f32.mrf.mxu0
        %v797 = vadd.f32 0.0, %v796
        %v798 = vpop.f32.mrf.mxu0
        %v799 = vpop.f32.mrf.mxu0
        %v800 = vadd.f32 0.0, %v799
        %v801 = vpop.f32.mrf.mxu0
        %802 = vmatprep.mubr.bf16.mxu0 0
        %803 = vmatmul.mubr.bf16.gmra.mxu0 %v724
        %v804 = vpop.f32.mrf.mxu0
        %v805 = vadd.f32 0.0, %v804
        %v806 = vpop.f32.mrf.mxu0
        %v807 = vpop.f32.mrf.mxu0
        %v808 = vadd.f32 0.0, %v807
        %v809 = vpop.f32.mrf.mxu0
        %810 = vmatprep.mubr.bf16.mxu0 0
        %811 = vmatmul.mubr.bf16.gmra.mxu0 %v727
        %v812 = vpop.f32.mrf.mxu0
        %v813 = vadd.f32 0.0, %v812
        %v814 = vpop.f32.mrf.mxu0
        %v815 = vpop.f32.mrf.mxu0
        %v816 = vadd.f32 0.0, %v815
        %v817 = vpop.f32.mrf.mxu0
        %818 = vmatprep.mubr.bf16.mxu0 0
        %819 = vmatmul.mubr.bf16.gmra.mxu0 %v730
        %v820 = vpop.f32.mrf.mxu0
        %v821 = vadd.f32 0.0, %v820
        %v822 = vpop.f32.mrf.mxu0
        %v823 = vpop.f32.mrf.mxu0
        %v824 = vadd.f32 0.0, %v823
        %v825 = vpop.f32.mrf.mxu0
        %826 = vmatprep.mubr.bf16.mxu0 0
        %827 = vmatmul.mubr.bf16.gmra.mxu0 %v733
        %v828 = vpop.f32.mrf.mxu0
        %v829 = vadd.f32 0.0, %v828
        %v830 = vpop.f32.mrf.mxu0
        %v831 = vpop.f32.mrf.mxu0
        %v832 = vadd.f32 0.0, %v831
        %v833 = vpop.f32.mrf.mxu0
        %834 = vdwg.mxu0
        %v835 = vsel %vm317, %v773, -1e+30
        %v836 = vsel %vm317, %v776, -1e+30
        %v837 = vsel %vm317, %v781, -1e+30
        %v838 = vsel %vm317, %v784, -1e+30
        %v839 = vsel %vm317, %v789, -1e+30
        %v840 = vsel %vm317, %v792, -1e+30
        %v841 = vsel %vm317, %v797, -1e+30
        %v842 = vsel %vm317, %v800, -1e+30
        %v843 = vsel %vm317, %v805, -1e+30
        %v844 = vsel %vm317, %v808, -1e+30
        %v845 = vsel %vm317, %v813, -1e+30
        %v846 = vsel %vm317, %v816, -1e+30
        %v847 = vsel %vm317, %v821, -1e+30
        %v848 = vsel %vm317, %v824, -1e+30
        %v849 = vsel %vm317, %v829, -1e+30
        %v850 = vsel %vm317, %v832, -1e+30
        %851 = vmax.xlane.f32.xlu0 %v835
        %v852 = vpop.xlane.xlu0 %851
        %853 = vmax.xlane.f32.xlu0 %v836
        %v854 = vpop.xlane.xlu0 %853
        %855 = vmax.xlane.f32.xlu0 %v837
        %v856 = vpop.xlane.xlu0 %855
        %857 = vmax.xlane.f32.xlu0 %v838
        %v858 = vpop.xlane.xlu0 %857
        %859 = vmax.xlane.f32.xlu0 %v839
        %v860 = vpop.xlane.xlu0 %859
        %861 = vmax.xlane.f32.xlu0 %v840
        %v862 = vpop.xlane.xlu0 %861
        %863 = vmax.xlane.f32.xlu0 %v841
        %v864 = vpop.xlane.xlu0 %863
        %865 = vmax.xlane.f32.xlu0 %v842
        %v866 = vpop.xlane.xlu0 %865
        %867 = vmax.xlane.f32.xlu0 %v843
        %v868 = vpop.xlane.xlu0 %867
        %869 = vmax.xlane.f32.xlu0 %v844
        %v870 = vpop.xlane.xlu0 %869
        %871 = vmax.xlane.f32.xlu0 %v845
        %v872 = vpop.xlane.xlu0 %871
        %873 = vmax.xlane.f32.xlu0 %v846
        %v874 = vpop.xlane.xlu0 %873
        %875 = vmax.xlane.f32.xlu0 %v847
        %v876 = vpop.xlane.xlu0 %875
        %877 = vmax.xlane.f32.xlu0 %v848
        %v878 = vpop.xlane.xlu0 %877
        %879 = vmax.xlane.f32.xlu0 %v849
        %v880 = vpop.xlane.xlu0 %879
        %881 = vmax.xlane.f32.xlu0 %v850
        %v882 = vpop.xlane.xlu0 %881
        %v883 = vsub.f32 %v835, %v852
        %v884 = vsub.f32 %v836, %v854
        %v885 = vsub.f32 %v837, %v856
        %v886 = vsub.f32 %v838, %v858
        %v887 = vsub.f32 %v839, %v860
        %v888 = vsub.f32 %v840, %v862
        %v889 = vsub.f32 %v841, %v864
        %v890 = vsub.f32 %v842, %v866
        %v891 = vsub.f32 %v843, %v868
        %v892 = vsub.f32 %v844, %v870
        %v893 = vsub.f32 %v845, %v872
        %v894 = vsub.f32 %v846, %v874
        %v895 = vsub.f32 %v847, %v876
        %v896 = vsub.f32 %v848, %v878
        %v897 = vsub.f32 %v849, %v880
        %v898 = vsub.f32 %v850, %v882
        %v899 = vmul.f32 %v883, 1.442695
        %v900 = vpow.pop %v899
        %v901 = vmul.f32 %v884, 1.442695
        %v902 = vpow.pop %v901
        %v903 = vmul.f32 %v885, 1.442695
        %v904 = vpow.pop %v903
        %v905 = vmul.f32 %v886, 1.442695
        %v906 = vpow.pop %v905
        %v907 = vmul.f32 %v887, 1.442695
        %v908 = vpow.pop %v907
        %v909 = vmul.f32 %v888, 1.442695
        %v910 = vpow.pop %v909
        %v911 = vmul.f32 %v889, 1.442695
        %v912 = vpow.pop %v911
        %v913 = vmul.f32 %v890, 1.442695
        %v914 = vpow.pop %v913
        %v915 = vmul.f32 %v891, 1.442695
        %v916 = vpow.pop %v915
        %v917 = vmul.f32 %v892, 1.442695
        %v918 = vpow.pop %v917
        %v919 = vmul.f32 %v893, 1.442695
        %v920 = vpow.pop %v919
        %v921 = vmul.f32 %v894, 1.442695
        %v922 = vpow.pop %v921
        %v923 = vmul.f32 %v895, 1.442695
        %v924 = vpow.pop %v923
        %v925 = vmul.f32 %v896, 1.442695
        %v926 = vpow.pop %v925
        %v927 = vmul.f32 %v897, 1.442695
        %v928 = vpow.pop %v927
        %v929 = vmul.f32 %v898, 1.442695
        %v930 = vpow.pop %v929
        %931 = vadd.xlane.f32.xlu0 %v900
        %v932 = vpop.xlane.xlu0 %931
        %933 = vadd.xlane.f32.xlu0 %v902
        %v934 = vpop.xlane.xlu0 %933
        %935 = vadd.xlane.f32.xlu0 %v904
        %v936 = vpop.xlane.xlu0 %935
        %937 = vadd.xlane.f32.xlu0 %v906
        %v938 = vpop.xlane.xlu0 %937
        %939 = vadd.xlane.f32.xlu0 %v908
        %v940 = vpop.xlane.xlu0 %939
        %941 = vadd.xlane.f32.xlu0 %v910
        %v942 = vpop.xlane.xlu0 %941
        %943 = vadd.xlane.f32.xlu0 %v912
        %v944 = vpop.xlane.xlu0 %943
        %945 = vadd.xlane.f32.xlu0 %v914
        %v946 = vpop.xlane.xlu0 %945
        %947 = vadd.xlane.f32.xlu0 %v916
        %v948 = vpop.xlane.xlu0 %947
        %949 = vadd.xlane.f32.xlu0 %v918
        %v950 = vpop.xlane.xlu0 %949
        %951 = vadd.xlane.f32.xlu0 %v920
        %v952 = vpop.xlane.xlu0 %951
        %953 = vadd.xlane.f32.xlu0 %v922
        %v954 = vpop.xlane.xlu0 %953
        %955 = vadd.xlane.f32.xlu0 %v924
        %v956 = vpop.xlane.xlu0 %955
        %957 = vadd.xlane.f32.xlu0 %v926
        %v958 = vpop.xlane.xlu0 %957
        %959 = vadd.xlane.f32.xlu0 %v928
        %v960 = vpop.xlane.xlu0 %959
        %961 = vadd.xlane.f32.xlu0 %v930
        %v962 = vpop.xlane.xlu0 %961
        %v963 = vrcp.pop %v932
        %v964 = vrcp.pop %v934
        %v965 = vrcp.pop %v936
        %v966 = vrcp.pop %v938
        %v967 = vrcp.pop %v940
        %v968 = vrcp.pop %v942
        %v969 = vrcp.pop %v944
        %v970 = vrcp.pop %v946
        %v971 = vrcp.pop %v948
        %v972 = vrcp.pop %v950
        %v973 = vrcp.pop %v952
        %v974 = vrcp.pop %v954
        %v975 = vrcp.pop %v956
        %v976 = vrcp.pop %v958
        %v977 = vrcp.pop %v960
        %v978 = vrcp.pop %v962
        %v979 = vmul.f32 %v900, %v963
        %v980 = vmul.f32 %v902, %v964
        %v981 = vmul.f32 %v904, %v965
        %v982 = vmul.f32 %v906, %v966
        %v983 = vmul.f32 %v908, %v967
        %v984 = vmul.f32 %v910, %v968
        %v985 = vmul.f32 %v912, %v969
        %v986 = vmul.f32 %v914, %v970
        %v987 = vmul.f32 %v916, %v971
        %v988 = vmul.f32 %v918, %v972
        %v989 = vmul.f32 %v920, %v973
        %v990 = vmul.f32 %v922, %v974
        %v991 = vmul.f32 %v924, %v975
        %v992 = vmul.f32 %v926, %v976
        %v993 = vmul.f32 %v928, %v977
        %v994 = vmul.f32 %v930, %v978
        %v995 = vpack.c.bf16 %v980, %v979
        %v996 = vpack.c.bf16 %v982, %v981
        %v997 = vpack.c.bf16 %v984, %v983
        %v998 = vpack.c.bf16 %v986, %v985
        %v999 = vpack.c.bf16 %v988, %v987
        %v1000 = vpack.c.bf16 %v990, %v989
        %v1001 = vpack.c.bf16 %v992, %v991
        %v1002 = vpack.c.bf16 %v994, %v993
        %1011 = vrot.lane.b32.xlu0 %v702, 112
        %v1012 = vpop.permute.xlu0 %1011
        %1013 = vrot.lane.b32.xlu0 %v703, 112
        %v1014 = vpop.permute.xlu0 %1013
        %1015 = vrot.lane.b32.xlu0 %v704, 112
        %v1016 = vpop.permute.xlu0 %1015
        %1017 = vrot.lane.b32.xlu0 %v705, 112
        %v1018 = vpop.permute.xlu0 %1017
        %1019 = vrot.lane.b32.xlu0 %v706, 112
        %v1020 = vpop.permute.xlu0 %1019
        %1021 = vrot.lane.b32.xlu0 %v707, 112
        %v1022 = vpop.permute.xlu0 %1021
        %1023 = vrot.lane.b32.xlu0 %v708, 112
        %v1024 = vpop.permute.xlu0 %1023
        %1025 = vrot.lane.b32.xlu0 %v709, 112
        %v1026 = vpop.permute.xlu0 %1025
        %1035 = vmatprep.subr.bf16.mxu0 0
        %1036 = vmatpush1.bf16.msra.mxu0 %v1026
        %1037 = vmatprep.subr.bf16.mxu0 0
        %1038 = vmatpush1.bf16.msra.mxu0 %v1024
        %1039 = vmatprep.subr.bf16.mxu0 0
        %1040 = vmatpush1.bf16.msra.mxu0 %v1022
        %1041 = vmatprep.subr.bf16.mxu0 0
        %1042 = vmatpush1.bf16.msra.mxu0 %v1020
        %1043 = vmatprep.subr.bf16.mxu0 0
        %1044 = vmatpush1.bf16.msra.mxu0 %v1018
        %1045 = vmatprep.subr.bf16.mxu0 0
        %1046 = vmatpush1.bf16.msra.mxu0 %v1016
        %1047 = vmatprep.subr.bf16.mxu0 0
        %1048 = vmatpush1.bf16.msra.mxu0 %v1014
        %1049 = vmatprep.subr.bf16.mxu0 0
        %1050 = vmatpush1.bf16.msra.mxu0 %v1012
        %1051 = vmatprep.subr.bf16.mxu0 0
        %1052 = vmatpush2.bf16.msra.mxu0 0
        %1053 = vmatprep.subr.bf16.mxu0 0
        %1054 = vmatpush2.bf16.msra.mxu0 0
        %1055 = vmatprep.subr.bf16.mxu0 0
        %1056 = vmatpush2.bf16.msra.mxu0 0
        %1057 = vmatprep.subr.bf16.mxu0 0
        %1058 = vmatpush2.bf16.msra.mxu0 0
        %1059 = vmatprep.subr.bf16.mxu0 0
        %1060 = vmatpush2.bf16.msra.mxu0 0
        %1061 = vmatprep.subr.bf16.mxu0 0
        %1062 = vmatpush2.bf16.msra.mxu0 0
        %1063 = vmatprep.subr.bf16.mxu0 0
        %1064 = vmatpush2.bf16.msra.mxu0 0
        %1065 = vmatprep.subr.bf16.mxu0 0
        %1066 = vmatpush2.bf16.msra.mxu0 0
        %1067 = vmatprep.mubr.bf16.mxu0 0
        %1068 = vmatmul.mubr.bf16.gmra.mxu0 %v995
        %v1069 = vpop.f32.mrf.mxu0
        %v1070 = vadd.f32 0.0, %v1069
        %v1071 = vpop.f32.mrf.mxu0
        %v1072 = vpop.f32.mrf.mxu0
        %v1073 = vadd.f32 0.0, %v1072
        %v1074 = vpop.f32.mrf.mxu0
        %1075 = vmatprep.mubr.bf16.mxu0 0
        %1076 = vmatmul.mubr.bf16.gmra.mxu0 %v996
        %v1077 = vpop.f32.mrf.mxu0
        %v1078 = vadd.f32 0.0, %v1077
        %v1079 = vpop.f32.mrf.mxu0
        %v1080 = vpop.f32.mrf.mxu0
        %v1081 = vadd.f32 0.0, %v1080
        %v1082 = vpop.f32.mrf.mxu0
        %1083 = vmatprep.mubr.bf16.mxu0 0
        %1084 = vmatmul.mubr.bf16.gmra.mxu0 %v997
        %v1085 = vpop.f32.mrf.mxu0
        %v1086 = vadd.f32 0.0, %v1085
        %v1087 = vpop.f32.mrf.mxu0
        %v1088 = vpop.f32.mrf.mxu0
        %v1089 = vadd.f32 0.0, %v1088
        %v1090 = vpop.f32.mrf.mxu0
        %1091 = vmatprep.mubr.bf16.mxu0 0
        %1092 = vmatmul.mubr.bf16.gmra.mxu0 %v998
        %v1093 = vpop.f32.mrf.mxu0
        %v1094 = vadd.f32 0.0, %v1093
        %v1095 = vpop.f32.mrf.mxu0
        %v1096 = vpop.f32.mrf.mxu0
        %v1097 = vadd.f32 0.0, %v1096
        %v1098 = vpop.f32.mrf.mxu0
        %1099 = vmatprep.mubr.bf16.mxu0 0
        %1100 = vmatmul.mubr.bf16.gmra.mxu0 %v999
        %v1101 = vpop.f32.mrf.mxu0
        %v1102 = vadd.f32 0.0, %v1101
        %v1103 = vpop.f32.mrf.mxu0
        %v1104 = vpop.f32.mrf.mxu0
        %v1105 = vadd.f32 0.0, %v1104
        %v1106 = vpop.f32.mrf.mxu0
        %1107 = vmatprep.mubr.bf16.mxu0 0
        %1108 = vmatmul.mubr.bf16.gmra.mxu0 %v1000
        %v1109 = vpop.f32.mrf.mxu0
        %v1110 = vadd.f32 0.0, %v1109
        %v1111 = vpop.f32.mrf.mxu0
        %v1112 = vpop.f32.mrf.mxu0
        %v1113 = vadd.f32 0.0, %v1112
        %v1114 = vpop.f32.mrf.mxu0
        %1115 = vmatprep.mubr.bf16.mxu0 0
        %1116 = vmatmul.mubr.bf16.gmra.mxu0 %v1001
        %v1117 = vpop.f32.mrf.mxu0
        %v1118 = vadd.f32 0.0, %v1117
        %v1119 = vpop.f32.mrf.mxu0
        %v1120 = vpop.f32.mrf.mxu0
        %v1121 = vadd.f32 0.0, %v1120
        %v1122 = vpop.f32.mrf.mxu0
        %1123 = vmatprep.mubr.bf16.mxu0 0
        %1124 = vmatmul.mubr.bf16.gmra.mxu0 %v1002
        %v1125 = vpop.f32.mrf.mxu0
        %v1126 = vadd.f32 0.0, %v1125
        %v1127 = vpop.f32.mrf.mxu0
        %v1128 = vpop.f32.mrf.mxu0
        %v1129 = vadd.f32 0.0, %v1128
        %v1130 = vpop.f32.mrf.mxu0
        %1131 = vdwg.mxu0
        %v1132 = vstv %s210
        %v1133 = vmul.f32 %v1132, %v1070
        %v1134 = vmul.f32 %v1132, %v1073
        %v1135 = vmul.f32 %v1132, %v1078
        %v1136 = vmul.f32 %v1132, %v1081
        %v1137 = vmul.f32 %v1132, %v1086
        %v1138 = vmul.f32 %v1132, %v1089
        %v1139 = vmul.f32 %v1132, %v1094
        %v1140 = vmul.f32 %v1132, %v1097
        %v1141 = vmul.f32 %v1132, %v1102
        %v1142 = vmul.f32 %v1132, %v1105
        %v1143 = vmul.f32 %v1132, %v1110
        %v1144 = vmul.f32 %v1132, %v1113
        %v1145 = vmul.f32 %v1132, %v1118
        %v1146 = vmul.f32 %v1132, %v1121
        %v1147 = vmul.f32 %v1132, %v1126
        %v1148 = vmul.f32 %v1132, %v1129
        %v1149 = vadd.f32 %v1133, %v351
        %v1150 = vadd.f32 %v1134, %v352
        %v1151 = vadd.f32 %v1135, %v353
        %v1152 = vadd.f32 %v1136, %v354
        %v1153 = vadd.f32 %v1137, %v355
        %v1154 = vadd.f32 %v1138, %v356
        %v1155 = vadd.f32 %v1139, %v357
        %v1156 = vadd.f32 %v1140, %v358
        %v1157 = vadd.f32 %v1141, %v359
        %v1158 = vadd.f32 %v1142, %v360
        %v1159 = vadd.f32 %v1143, %v361
        %v1160 = vadd.f32 %v1144, %v362
        %v1161 = vadd.f32 %v1145, %v363
        %v1162 = vadd.f32 %v1146, %v364
        %v1163 = vadd.f32 %v1147, %v365
        %v1164 = vadd.f32 %v1148, %v366
        %1165 = vxpose.xlu0.b32.start [1/16] %v1149, 128
        %1166 = vxpose.xlu0.b32.cont [2/16] %v1150, 128
        %1167 = vxpose.xlu0.b32.cont [3/16] %v1151, 128
        %1168 = vxpose.xlu0.b32.cont [4/16] %v1152, 128
        %1169 = vxpose.xlu0.b32.cont [5/16] %v1153, 128
        %1170 = vxpose.xlu0.b32.cont [6/16] %v1154, 128
        %1171 = vxpose.xlu0.b32.cont [7/16] %v1155, 128
        %1172 = vxpose.xlu0.b32.cont [8/16] %v1156, 128
        %1173 = vxpose.xlu0.b32.cont [9/16] %v1157, 128
        %1174 = vxpose.xlu0.b32.cont [10/16] %v1158, 128
        %1175 = vxpose.xlu0.b32.cont [11/16] %v1159, 128
        %1176 = vxpose.xlu0.b32.cont [12/16] %v1160, 128
        %1177 = vxpose.xlu0.b32.cont [13/16] %v1161, 128
        %1178 = vxpose.xlu0.b32.cont [14/16] %v1162, 128
        %1179 = vxpose.xlu0.b32.cont [15/16] %v1163, 128
        %1180 = vxpose.xlu0.b32.end [16/16] %v1164, 128
        %v1181 = vpop.trf.xlu0
        %v1182 = vpop.trf.xlu0
        %v1183 = vpop.trf.xlu0
        %v1184 = vpop.trf.xlu0
        %v1185 = vpop.trf.xlu0
        %v1186 = vpop.trf.xlu0
        %v1187 = vpop.trf.xlu0
        %v1188 = vpop.trf.xlu0
        %v1189 = vpop.trf.xlu0
        %v1190 = vpop.trf.xlu0
        %v1191 = vpop.trf.xlu0
        %v1192 = vpop.trf.xlu0
        %v1193 = vpop.trf.xlu0
        %v1194 = vpop.trf.xlu0
        %v1195 = vpop.trf.xlu0
        %v1196 = vpop.trf.xlu0
        %1197 = vst [vmem:[%s206] sm:$0xff] %v1181
        %p1198 = scmp.lt.s32.totalorder %s16, 1
        %s1199 = scalar_select %p1198, %s16, 1
        %s1200 = smul.addr %s1199, 8
        %s1201 = scalar_lea.vmem %s4, %s1200
        // Predicated region
        $region41: #{coatt.1} parent=35 // pred_check
          %p1202 = pneg %p123
        $region42: #{coatt.1} parent=35 // pred_check_branch
          %1204 = sbr.rel (%p1202) target = $region44
        $region43: #{coatt.1} parent=35 // pred_region
          _
        $region44: #{coatt.1} parent=35 // pred_fallthru
          _
      $region36: #{coatt.1} parent=5 // pred_fallthru
        _
      %p1205 = scmp.le.s32.totalorder 2, %s11
      // Predicated region
      $region45: #{coatt.1} parent=5 // pred_check
        %p1206 = pneg %p1205
      $region46: #{coatt.1} parent=5 // pred_check_branch
        %1208 = sbr.rel (%p1206) target = $region48
      $region47: #{coatt.1} parent=5 // pred_region
        %s1209 = ssub.s32 %s11, 2
        // Predicated region
        $region49: #{coatt.1} parent=47 // pred_check
          %p1210 = pneg %p129
        $region50: #{coatt.1} parent=47 // pred_check_branch
          %1212 = sbr.rel (%p1210) target = $region52
        $region51: #{coatt.1} parent=47 // pred_region
          %p1213 = scmp.lt.s32.totalorder %s17, 1
          %s1214 = scalar_select %p1213, %s17, 1
          %s1215 = smul.addr %s1214, 8
          %s1216 = scalar_lea.vmem %s4, %s1215
        $region52: #{coatt.1} parent=47 // pred_fallthru
          _
      $region48: #{coatt.1} parent=5 // pred_fallthru
        _
    $region6: #{coatt.1} parent=1 // loop_footer
      %s15 = sadd.s32 1, %s11
    $region7: #{coatt.1} parent=1 // loop_footer_branch
      %10 = sbr.rel target = $region3
    $region8: #{coatt.1} parent=1 // loop_exit
      _
    %1217 = vsyncpa [#allocation3], 1
    %s1218 = scalar_lea.sflag [#allocation3], 1
    %1219 = vsyncpa %s1218, 1

</llo_original>
